<compile_context>
chip_gen: v5e
topology: v5e:2x2
jax: 0.10.0
libtpu: 0.0.40
codegen_flags: <defaults>
</compile_context>

<pallas_src>
import jax
import jax.numpy as jnp
from jax.experimental import pallas as pl
from jax.experimental.pallas import tpu as pltpu


def _cdiv(a, b):
    return -(-a // b)


def _round_up(x, m):
    return _cdiv(x, m) * m


def _pick_batch_tiling(B, block_b, min_grid_steps):
    """Choose (TB, n_steps, B_pad) with minimal batch padding.

    - at most `block_b` rows per grid step,
    - at least `min_grid_steps` steps (v7x: give both TensorCores work),
    - TB a multiple of 8 sublanes, never more steps than 8-row groups.
    """
    max_steps = max(1, _cdiv(B, 8))
    n_steps = min(max(_cdiv(B, block_b), min_grid_steps), max_steps)
    tb = _round_up(_cdiv(B, n_steps), 8)
    n_steps = _cdiv(B, tb)          # rounding tb up may drop a step
    b_pad = n_steps * tb
    return tb, n_steps, b_pad


def _agent_mlp_kernel(x_ref, w1_ref, b1_ref, w2_ref, b2_ref, w3_ref, b3_ref,
                      o_ref):
    x = x_ref[...]                                             # (TB, D) f32

    # fc1 + relu (f32 accumulation on the MXU)
    h1 = jnp.dot(x, w1_ref[...], preferred_element_type=jnp.float32)
    h1 = jnp.maximum(h1 + b1_ref[...], 0.0)                    # (TB, 64)

    # fc2 + relu
    h2 = jnp.dot(h1, w2_ref[...], preferred_element_type=jnp.float32)
    h2 = jnp.maximum(h2 + b2_ref[...], 0.0)                    # (TB, 32)

    # out + softmax over the 128-wide padded logit block; padded columns carry
    # a -1e30 bias, so exp() underflows to exactly 0 and they drop out of the
    # denominator.  Exact f32 division keeps row sums == 1 (bit-accurate vs
    # the jnp reference).
    logits = jnp.dot(h2, w3_ref[...], preferred_element_type=jnp.float32)
    logits = logits + b3_ref[...]                              # (TB, A_pad)
    m = jnp.max(logits, axis=-1, keepdims=True)
    e = jnp.exp(logits - m)
    denom = jnp.sum(e, axis=-1, keepdims=True)
    probs = e / denom

    # Store only the real action columns (lane-narrow but contiguous in HBM).
    o_ref[...] = probs[:, : o_ref.shape[-1]].astype(o_ref.dtype)


def agent_forward(x, params, *, block_b=1024, min_grid_steps=2,
                  min_kernel_batch=0):
    """x: (B, observation_dims) f32 -> (B, n_actions) softmax probabilities.

    block_b:          max rows per grid step (weights stay VMEM-resident).
    min_grid_steps:   lower bound on grid steps (>=2 keeps both v7x TCs busy).
    min_kernel_batch: batches smaller than this use the plain-jnp path
                      (recommended ~256 in production; 0 = always use Pallas).
    """
    if x.shape[0] < min_kernel_batch:
        return agent_forward_ref(x, params)

    w1, b1, w2, b2, w3, b3 = params
    B, D = x.shape
    A = w3.shape[1]

    # Internal (VMEM-only) lane width for the softmax math.
    A_pad = _round_up(max(A, 128), 128)

    TB, n_steps, B_pad = _pick_batch_tiling(B, block_b, min_grid_steps)
    x_p = x if B_pad == B else jnp.pad(x, ((0, B_pad - B), (0, 0)))

    # Pad the out-layer to A_pad columns: zero weights, -1e30 bias on pads.
    w3_p = jnp.pad(w3, ((0, 0), (0, A_pad - A)))
    b3_p = jnp.pad(b3, ((0, 0), (0, A_pad - A)), constant_values=-1e30)

    flops = 2 * B_pad * (D * 64 + 64 * 32 + 32 * A_pad)
    bytes_accessed = 4 * (B_pad * D + B_pad * A + w1.size + b1.size
                          + w2.size + b2.size + w3_p.size + b3_p.size)
    cost = pl.CostEstimate(flops=flops,
                           transcendentals=B_pad * A_pad,
                           bytes_accessed=bytes_accessed)

    out = pl.pallas_call(
        _agent_mlp_kernel,
        out_shape=jax.ShapeDtypeStruct((B_pad, A), jnp.float32),
        grid=(n_steps,),
        in_specs=[
            pl.BlockSpec((TB, D), lambda i: (i, 0)),        # x tile (pipelined)
            pl.BlockSpec(w1.shape, lambda i: (0, 0)),       # weights/biases:
            pl.BlockSpec(b1.shape, lambda i: (0, 0)),       # block index never
            pl.BlockSpec(w2.shape, lambda i: (0, 0)),       # changes -> VMEM
            pl.BlockSpec(b2.shape, lambda i: (0, 0)),       # resident, no
            pl.BlockSpec(w3_p.shape, lambda i: (0, 0)),     # re-DMA.
            pl.BlockSpec(b3_p.shape, lambda i: (0, 0)),
        ],
        out_specs=pl.BlockSpec((TB, A), lambda i: (i, 0)),  # lane-narrow output
        compiler_params=pltpu.CompilerParams(
            dimension_semantics=("parallel",)),             # v7x: shard batch
        cost_estimate=cost,
    )(x_p, w1, b1, w2, b2, w3_p, b3_p)

    return out if B_pad == B else out[:B]


def init_params(key, observation_dims, n_actions):
    """Deterministic init mimicking nn.Linear's uniform(-1/sqrt(fan_in), +)."""
    def linear(key, fan_in, fan_out):
        kw, kb = jax.random.split(key)
        bound = 1.0 / jnp.sqrt(fan_in)
        # stored as (in, out) == PyTorch weight.T
        w = jax.random.uniform(kw, (fan_in, fan_out), jnp.float32, -bound, bound)
        b = jax.random.uniform(kb, (1, fan_out), jnp.float32, -bound, bound)
        return w, b

    k1, k2, k3 = jax.random.split(key, 3)
    w1, b1 = linear(k1, observation_dims, 64)
    w2, b2 = linear(k2, 64, 32)
    w3, b3 = linear(k3, 32, n_actions)
    return (w1, b1, w2, b2, w3, b3)


def agent_forward_ref(x, params):
    """Pure-JAX reference for correctness check."""
    w1, b1, w2, b2, w3, b3 = params
    h1 = jax.nn.relu(x @ w1 + b1)
    h2 = jax.nn.relu(h1 @ w2 + b2)
    return jax.nn.softmax(h2 @ w3 + b3, axis=-1)


if __name__ == "__main__":
    key = jax.random.PRNGKey(0)
    k_params, k_x1, k_x2 = jax.random.split(key, 3)

    observation_dims = 8   # env.observation_space.shape[0]
    n_actions = 4          # env.action_space.n

    params = init_params(k_params, observation_dims, n_actions)

    # --- small-batch check (native module shapes) ---
    batch = 2
    x = jax.random.normal(k_x1, (batch, observation_dims), jnp.float32)
    out = jax.block_until_ready(agent_forward(x, params))
    ref = agent_forward_ref(x, params)
    assert out.shape == (batch, n_actions)
    assert jnp.allclose(jnp.sum(out, axis=-1), 1.0, atol=1e-3)
    assert jnp.allclose(out, ref, atol=1e-3, rtol=1e-3)

    # --- larger batch: exercises padding-balanced tile + multi-step grid ---
    batch2 = 600
    x2 = jax.random.normal(k_x2, (batch2, observation_dims), jnp.float32)
    out2 = jax.block_until_ready(agent_forward(x2, params))
    ref2 = agent_forward_ref(x2, params)
    assert out2.shape == (batch2, n_actions)
    assert jnp.allclose(jnp.sum(out2, axis=-1), 1.0, atol=1e-3)
    assert jnp.allclose(out2, ref2, atol=1e-3, rtol=1e-3)

    print("KERNEL_OK")
</pallas_src>

<mosaic_0001>
module attributes {stable_mosaic.version = 11 : i64} {
  func.func @_agent_mlp_kernel(%arg0: i32, %arg1: memref<8x8xf32, #tpu.memory_space<vmem>>, %arg2: memref<8x64xf32, #tpu.memory_space<vmem>>, %arg3: memref<1x64xf32, #tpu.memory_space<vmem>>, %arg4: memref<64x32xf32, #tpu.memory_space<vmem>>, %arg5: memref<1x32xf32, #tpu.memory_space<vmem>>, %arg6: memref<32x128xf32, #tpu.memory_space<vmem>>, %arg7: memref<1x128xf32, #tpu.memory_space<vmem>>, %arg8: memref<8x4xf32, #tpu.memory_space<vmem>>) attributes {dimension_semantics = [#tpu.dimension_semantics<parallel>], iteration_bounds = array<i64: 1>, scalar_prefetch = 0 : i64, scratch_operands = 0 : i64, tpu.core_type = #tpu.core_type<tc>, window_params = [{transform_indices = @transform_0, window_bounds = array<i64: 8, 8>}, {pipeline_mode = #tpu.pipeline_mode<synchronous>, transform_indices = @transform_1, window_bounds = array<i64: 8, 64>}, {pipeline_mode = #tpu.pipeline_mode<synchronous>, transform_indices = @transform_2, window_bounds = array<i64: 1, 64>}, {pipeline_mode = #tpu.pipeline_mode<synchronous>, transform_indices = @transform_3, window_bounds = array<i64: 64, 32>}, {pipeline_mode = #tpu.pipeline_mode<synchronous>, transform_indices = @transform_4, window_bounds = array<i64: 1, 32>}, {pipeline_mode = #tpu.pipeline_mode<synchronous>, transform_indices = @transform_5, window_bounds = array<i64: 32, 128>}, {pipeline_mode = #tpu.pipeline_mode<synchronous>, transform_indices = @transform_6, window_bounds = array<i64: 1, 128>}, {transform_indices = @transform_7, window_bounds = array<i64: 8, 4>}]} {
    %c0 = arith.constant 0 : index
    %c0_0 = arith.constant 0 : index
    %0 = vector.load %arg1[%c0, %c0_0] : memref<8x8xf32, #tpu.memory_space<vmem>>, vector<8x8xf32>
    %c0_1 = arith.constant 0 : index
    %c0_2 = arith.constant 0 : index
    %1 = vector.load %arg2[%c0_1, %c0_2] : memref<8x64xf32, #tpu.memory_space<vmem>>, vector<8x64xf32>
    %cst = arith.constant dense<0.000000e+00> : vector<8x64xf32>
    %2 = tpu.matmul %0, %1, %cst {dimension_numbers = #tpu.dot_dimension_numbers<[1], [0], [0], [1], [0, 0, 1, 1], [], []>} : vector<8x8xf32>, vector<8x64xf32>, vector<8x64xf32> -> vector<8x64xf32>
    %c0_3 = arith.constant 0 : index
    %c0_4 = arith.constant 0 : index
    %3 = vector.load %arg3[%c0_3, %c0_4] : memref<1x64xf32, #tpu.memory_space<vmem>>, vector<1x64xf32>
    %4 = vector.broadcast %3 : vector<1x64xf32> to vector<8x64xf32>
    %5 = arith.addf %2, %4 : vector<8x64xf32>
    %cst_5 = arith.constant 0.000000e+00 : f32
    %6 = vector.broadcast %cst_5 : f32 to vector<8x64xf32>
    %7 = arith.maximumf %5, %6 : vector<8x64xf32>
    %c0_6 = arith.constant 0 : index
    %c0_7 = arith.constant 0 : index
    %8 = vector.load %arg4[%c0_6, %c0_7] : memref<64x32xf32, #tpu.memory_space<vmem>>, vector<64x32xf32>
    %cst_8 = arith.constant dense<0.000000e+00> : vector<8x32xf32>
    %9 = tpu.matmul %7, %8, %cst_8 {dimension_numbers = #tpu.dot_dimension_numbers<[1], [0], [0], [1], [0, 0, 1, 1], [], []>} : vector<8x64xf32>, vector<64x32xf32>, vector<8x32xf32> -> vector<8x32xf32>
    %c0_9 = arith.constant 0 : index
    %c0_10 = arith.constant 0 : index
    %10 = vector.load %arg5[%c0_9, %c0_10] : memref<1x32xf32, #tpu.memory_space<vmem>>, vector<1x32xf32>
    %11 = vector.broadcast %10 : vector<1x32xf32> to vector<8x32xf32>
    %12 = arith.addf %9, %11 : vector<8x32xf32>
    %cst_11 = arith.constant 0.000000e+00 : f32
    %13 = vector.broadcast %cst_11 : f32 to vector<8x32xf32>
    %14 = arith.maximumf %12, %13 : vector<8x32xf32>
    %c0_12 = arith.constant 0 : index
    %c0_13 = arith.constant 0 : index
    %15 = vector.load %arg6[%c0_12, %c0_13] : memref<32x128xf32, #tpu.memory_space<vmem>>, vector<32x128xf32>
    %cst_14 = arith.constant dense<0.000000e+00> : vector<8x128xf32>
    %16 = tpu.matmul %14, %15, %cst_14 {dimension_numbers = #tpu.dot_dimension_numbers<[1], [0], [0], [1], [0, 0, 1, 1], [], []>} : vector<8x32xf32>, vector<32x128xf32>, vector<8x128xf32> -> vector<8x128xf32>
    %c0_15 = arith.constant 0 : index
    %c0_16 = arith.constant 0 : index
    %17 = vector.load %arg7[%c0_15, %c0_16] : memref<1x128xf32, #tpu.memory_space<vmem>>, vector<1x128xf32>
    %18 = vector.broadcast %17 : vector<1x128xf32> to vector<8x128xf32>
    %19 = arith.addf %16, %18 : vector<8x128xf32>
    %cst_17 = arith.constant dense<0xFF800000> : vector<8xf32>
    %20 = vector.multi_reduction <maximumf>, %19, %cst_17 [1] : vector<8x128xf32> to vector<8xf32>
    %21 = vector.shape_cast %20 : vector<8xf32> to vector<8x1xf32>
    %22 = vector.broadcast %21 : vector<8x1xf32> to vector<8x128xf32>
    %23 = arith.subf %19, %22 : vector<8x128xf32>
    %24 = math.exp %23 : vector<8x128xf32>
    %cst_18 = arith.constant dense<0.000000e+00> : vector<8xf32>
    %25 = vector.multi_reduction <add>, %24, %cst_18 [1] : vector<8x128xf32> to vector<8xf32>
    %26 = vector.shape_cast %25 : vector<8xf32> to vector<8x1xf32>
    %27 = vector.broadcast %26 : vector<8x1xf32> to vector<8x128xf32>
    %28 = arith.divf %24, %27 : vector<8x128xf32>
    %29 = vector.extract_strided_slice %28 {offsets = [0, 0], sizes = [8, 4], strides = [1, 1]} : vector<8x128xf32> to vector<8x4xf32>
    %c0_19 = arith.constant 0 : index
    %c0_20 = arith.constant 0 : index
    %30 = vector.load %arg8[%c0_19, %c0_20] : memref<8x4xf32, #tpu.memory_space<vmem>>, vector<8x4xf32>
    tpu.vector_store %arg8[%c0_19, %c0_20], %29 {strides = array<i32>} : memref<8x4xf32, #tpu.memory_space<vmem>>, vector<8x4xf32>,
    return
  }
  func.func @transform_0(%arg0: i32) -> (i32, i32) {
    %c0_i32 = arith.constant 0 : i32
    %c0_i32_0 = arith.constant 0 : i32
    return %arg0, %c0_i32 : i32, i32
  }
  func.func @transform_1(%arg0: i32) -> (i32, i32) {
    %c0_i32 = arith.constant 0 : i32
    %c0_i32_0 = arith.constant 0 : i32
    %c0_i32_1 = arith.constant 0 : i32
    return %c0_i32, %c0_i32_0 : i32, i32
  }
  func.func @transform_2(%arg0: i32) -> (i32, i32) {
    %c0_i32 = arith.constant 0 : i32
    %c0_i32_0 = arith.constant 0 : i32
    %c0_i32_1 = arith.constant 0 : i32
    return %c0_i32, %c0_i32_0 : i32, i32
  }
  func.func @transform_3(%arg0: i32) -> (i32, i32) {
    %c0_i32 = arith.constant 0 : i32
    %c0_i32_0 = arith.constant 0 : i32
    %c0_i32_1 = arith.constant 0 : i32
    return %c0_i32, %c0_i32_0 : i32, i32
  }
  func.func @transform_4(%arg0: i32) -> (i32, i32) {
    %c0_i32 = arith.constant 0 : i32
    %c0_i32_0 = arith.constant 0 : i32
    %c0_i32_1 = arith.constant 0 : i32
    return %c0_i32, %c0_i32_0 : i32, i32
  }
  func.func @transform_5(%arg0: i32) -> (i32, i32) {
    %c0_i32 = arith.constant 0 : i32
    %c0_i32_0 = arith.constant 0 : i32
    %c0_i32_1 = arith.constant 0 : i32
    return %c0_i32, %c0_i32_0 : i32, i32
  }
  func.func @transform_6(%arg0: i32) -> (i32, i32) {
    %c0_i32 = arith.constant 0 : i32
    %c0_i32_0 = arith.constant 0 : i32
    %c0_i32_1 = arith.constant 0 : i32
    return %c0_i32, %c0_i32_0 : i32, i32
  }
  func.func @transform_7(%arg0: i32) -> (i32, i32) {
    %c0_i32 = arith.constant 0 : i32
    %c0_i32_0 = arith.constant 0 : i32
    return %arg0, %c0_i32 : i32, i32
  }
}

</mosaic_0001>

<llo_original>
// kernel: tpu_custom_call.1
$region0: #{tpu_custom_call.1}
  #allocation0 [shape = 'u32[]', space=smem, size = 0x4, offset = 0x4, fixed_abs, tag = 'smem constant byte address 0x4 - core index']
  #allocation1 [shape = 'u32[72,128]{1,0:T(1,128)}', space=vmem, size = 0x9000, scoped, tag = 'internal scratch']
  %s0 = inlined_call_operand.vmem [shape: f32[8,8], index: 0, kind: input, shape index: {}]
  %s1 = inlined_call_operand.vmem [shape: f32[8,64], index: 1, kind: input, shape index: {}]
  %s2 = inlined_call_operand.vmem [shape: f32[1,64], index: 2, kind: input, shape index: {}]
  %s3 = inlined_call_operand.vmem [shape: f32[64,32], index: 3, kind: input, shape index: {}]
  %s4 = inlined_call_operand.vmem [shape: f32[1,32], index: 4, kind: input, shape index: {}]
  %s5 = inlined_call_operand.vmem [shape: f32[32,128], index: 5, kind: input, shape index: {}]
  %s6 = inlined_call_operand.vmem [shape: f32[1,128], index: 6, kind: input, shape index: {}]
  %s7 = inlined_call_operand.vmem [shape: f32[8,4], index: 7, kind: output, shape index: {}]
  %s8 = sld [smem:[#allocation0]]
  $region38: #{tpu_custom_call.1} parent=0
    _
  %s10 = ssub.s32 1, %s8
  %s11 = scalar_select 0, %s10, %s8
  // Predicated region
  $region2: #{tpu_custom_call.1} parent=0 // pred_check
    _
  $region3: #{tpu_custom_call.1} parent=0 // pred_check_branch
    %13 = sbr.rel (0) target = $region5
  $region4: #{tpu_custom_call.1} parent=0 // pred_region
    _
  $region5: #{tpu_custom_call.1} parent=0 // pred_fallthru
    _
  // Predicated region
  $region6: #{tpu_custom_call.1} parent=0 // pred_check
    _
  $region7: #{tpu_custom_call.1} parent=0 // pred_check_branch
    %15 = sbr.rel (0) target = $region9
  $region8: #{tpu_custom_call.1} parent=0 // pred_region
    _
  $region9: #{tpu_custom_call.1} parent=0 // pred_fallthru
    _
  // Predicated region
  $region10: #{tpu_custom_call.1} parent=0 // pred_check
    _
  $region11: #{tpu_custom_call.1} parent=0 // pred_check_branch
    %17 = sbr.rel (0) target = $region13
  $region12: #{tpu_custom_call.1} parent=0 // pred_region
    _
  $region13: #{tpu_custom_call.1} parent=0 // pred_fallthru
    _
  // Predicated region
  $region14: #{tpu_custom_call.1} parent=0 // pred_check
    _
  $region15: #{tpu_custom_call.1} parent=0 // pred_check_branch
    %19 = sbr.rel (0) target = $region17
  $region16: #{tpu_custom_call.1} parent=0 // pred_region
    _
  $region17: #{tpu_custom_call.1} parent=0 // pred_fallthru
    _
  // Predicated region
  $region18: #{tpu_custom_call.1} parent=0 // pred_check
    _
  $region19: #{tpu_custom_call.1} parent=0 // pred_check_branch
    %21 = sbr.rel (0) target = $region21
  $region20: #{tpu_custom_call.1} parent=0 // pred_region
    _
  $region21: #{tpu_custom_call.1} parent=0 // pred_fallthru
    _
  // Predicated region
  $region22: #{tpu_custom_call.1} parent=0 // pred_check
    _
  $region23: #{tpu_custom_call.1} parent=0 // pred_check_branch
    %23 = sbr.rel (0) target = $region25
  $region24: #{tpu_custom_call.1} parent=0 // pred_region
    _
  $region25: #{tpu_custom_call.1} parent=0 // pred_fallthru
    _
  // Predicated region
  $region26: #{tpu_custom_call.1} parent=0 // pred_check
    _
  $region27: #{tpu_custom_call.1} parent=0 // pred_check_branch
    %25 = sbr.rel (0) target = $region29
  $region28: #{tpu_custom_call.1} parent=0 // pred_region
    _
  $region29: #{tpu_custom_call.1} parent=0 // pred_fallthru
    _
  %v26 = vld [vmem:[%s0] sm:$0xff]
  %v27 = vld [vmem:[%s1] sm:$0xff]
  %v28 = vld [vmem:[%s2] sm:$0x1]
  %v30 = vperm.slane %v28, 0
  %vm32 = vcmask 64512
  %v34 = vsel %vm32, %v26, 0
  %36 = vmatpush.msra.mxu0 0.0
  %37 = vmatpush.msra.mxu0 0.0
  %38 = vmatpush.msra.mxu0 0.0
  %39 = vmatpush.msra.mxu0 0.0
  %40 = vmatpush.msra.mxu0 0.0
  %41 = vmatpush.msra.mxu0 0.0
  %42 = vmatpush.msra.mxu0 0.0
  %43 = vmatpush.msra.mxu0 0.0
  %44 = vmatpush.msra.mxu0 0.0
  %45 = vmatpush.msra.mxu0 0.0
  %46 = vmatpush.msra.mxu0 0.0
  %47 = vmatpush.msra.mxu0 0.0
  %48 = vmatpush.msra.mxu0 0.0
  %49 = vmatpush.msra.mxu0 0.0
  %50 = vmatpush.msra.mxu0 0.0
  %51 = vmatpush.msra.mxu0 %v27
  %52 = vmatmul.f32.gmra.mxu0 %v34
  %v53 = vpop.f32.mrf.mxu0
  %v54 = vadd.f32 %v30, %v53
  %55 = vdwg.mxu0
  %v56 = vmax.f32 %v54, 0.0
  %v57 = vld [vmem:[%s3] sm:$0xff]
  %v58 = vld [vmem:[%s3 + $0x8] sm:$0xff]
  %v59 = vld [vmem:[%s3 + $0x10] sm:$0xff]
  %v60 = vld [vmem:[%s3 + $0x18] sm:$0xff]
  %v61 = vld [vmem:[%s3 + $0x20] sm:$0xff]
  %v62 = vld [vmem:[%s3 + $0x28] sm:$0xff]
  %v63 = vld [vmem:[%s3 + $0x30] sm:$0xff]
  %v64 = vld [vmem:[%s3 + $0x38] sm:$0xff]
  %v65 = vld [vmem:[%s4] sm:$0x1]
  %v67 = vperm.slane %v65, 0
  %vm69 = vcmask 523264
  %v71 = vsel %vm69, %v56, 0
  %73 = vmatpush.msra.mxu0 0.0
  %74 = vmatpush.msra.mxu0 0.0
  %75 = vmatpush.msra.mxu0 0.0
  %76 = vmatpush.msra.mxu0 0.0
  %77 = vmatpush.msra.mxu0 0.0
  %78 = vmatpush.msra.mxu0 0.0
  %79 = vmatpush.msra.mxu0 0.0
  %80 = vmatpush.msra.mxu0 0.0
  %81 = vmatpush.msra.mxu0 %v64
  %82 = vmatpush.msra.mxu0 %v63
  %83 = vmatpush.msra.mxu0 %v62
  %84 = vmatpush.msra.mxu0 %v61
  %85 = vmatpush.msra.mxu0 %v60
  %86 = vmatpush.msra.mxu0 %v59
  %87 = vmatpush.msra.mxu0 %v58
  %88 = vmatpush.msra.mxu0 %v57
  %89 = vmatmul.f32.gmra.mxu0 %v71
  %v90 = vpop.f32.mrf.mxu0
  %v91 = vadd.f32 %v67, %v90
  %92 = vdwg.mxu0
  %v93 = vmax.f32 %v91, 0.0
  %v94 = vld [vmem:[%s5] sm:$0xff]
  %v95 = vld [vmem:[%s5 + $0x8] sm:$0xff]
  %v96 = vld [vmem:[%s5 + $0x10] sm:$0xff]
  %v97 = vld [vmem:[%s5 + $0x18] sm:$0xff]
  %v98 = vld [vmem:[%s6] sm:$0x1]
  %v100 = vperm.slane %v98, 0
  %vm102 = vcmask 261120
  %v104 = vsel %vm102, %v93, 0
  %106 = vmatpush.msra.mxu0 0.0
  %107 = vmatpush.msra.mxu0 0.0
  %108 = vmatpush.msra.mxu0 0.0
  %109 = vmatpush.msra.mxu0 0.0
  %110 = vmatpush.msra.mxu0 0.0
  %111 = vmatpush.msra.mxu0 0.0
  %112 = vmatpush.msra.mxu0 0.0
  %113 = vmatpush.msra.mxu0 0.0
  %114 = vmatpush.msra.mxu0 0.0
  %115 = vmatpush.msra.mxu0 0.0
  %116 = vmatpush.msra.mxu0 0.0
  %117 = vmatpush.msra.mxu0 0.0
  %118 = vmatpush.msra.mxu0 %v97
  %119 = vmatpush.msra.mxu0 %v96
  %120 = vmatpush.msra.mxu0 %v95
  %121 = vmatpush.msra.mxu0 %v94
  %122 = vmatmul.f32.gmra.mxu0 %v104
  %v123 = vpop.f32.mrf.mxu0
  %v124 = vadd.f32 %v100, %v123
  %125 = vdwg.mxu0
  %126 = vmax.xlane.f32.xlu0 %v124
  %v127 = vpop.xlane.xlu0 %126
  %v128 = vsub.f32 %v124, %v127
  %v129 = vmul.f32 %v128, 1.442695
  %v130 = vpow.pop %v129
  %131 = vadd.xlane.f32.xlu0 %v130
  %v132 = vpop.xlane.xlu0 %131
  %v133 = vrcp.pop %v132
  %v134 = vmul.f32 %v132, %v133
  %v135 = vsub.f32 1.0, %v134
  %v136 = vmul.f32 %v133, %v135
  %v137 = vadd.f32 %v133, %v136
  %vm138 = vweird.f32 %v132
  %vm139 = vweird.f32 %v133
  %vm140 = vmor %vm138, %vm139
  %v141 = vsel %vm140, %v133, %v137
  %v142 = vand.u32 2147483647, %v132
  %vm143 = vcmp.eq.f32.partialorder %v142, 8.507059e+37
  %v144 = vand.u32 %v132, 2147483648
  %v145 = vor.u32 1.1754944e-38, %v144
  %v146 = vsel %vm143, %v145, %v141
  %v147 = vmul.f32 %v130, %v146
  %vm148 = vcmask 31744
  %149 = vst.msk [vmem:[%s7] sm:$0xff] %vm148, %v147
  // Predicated region
  $region30: #{tpu_custom_call.1} parent=0 // pred_check
    _
  $region31: #{tpu_custom_call.1} parent=0 // pred_check_branch
    %151 = sbr.rel (0) target = $region33
  $region32: #{tpu_custom_call.1} parent=0 // pred_region
    _
  $region33: #{tpu_custom_call.1} parent=0 // pred_fallthru
    _
  // Predicated region
  $region34: #{tpu_custom_call.1} parent=0 // pred_check
    _
  $region35: #{tpu_custom_call.1} parent=0 // pred_check_branch
    %153 = sbr.rel (0) target = $region37
  $region36: #{tpu_custom_call.1} parent=0 // pred_region
    _
  $region37: #{tpu_custom_call.1} parent=0 // pred_fallthru
    _

</llo_original>
